<compile_context>
chip_gen: v6e
topology: v6e:2x2x1
jax: 0.10.0
libtpu: 0.0.40
codegen_flags: <defaults>
</compile_context>

<pallas_src>
import functools

import jax
import jax.numpy as jnp
from jax import lax
from jax.experimental import pallas as pl
from jax.experimental.pallas import tpu as pltpu


def _mpi_kernel(feat_ref, warp_ref, o_ref, *, num_color, planes_per_step):
    """Grid = (row_tile, plane_block); composites P planes per step."""
    m = pl.program_id(1)

    @pl.when(m == 0)
    def _():
        o_ref[...] = jnp.zeros_like(o_ref)

    C = feat_ref.shape[1]
    TH = feat_ref.shape[2]
    W = feat_ref.shape[3]

    def body(p, carry):
        # Upcast before tanh: keep elementwise/EUP math in f32 (v5e has no bf16 VPU/EUP).
        f = feat_ref[p].astype(jnp.float32)                # (C, TH, W)
        act = (jnp.tanh(f) + 1.0) * 0.5                    # features in [0, 1]
        # Horizontal bilinear resample as a (C*TH, W) x (W, W) matmul on the MXU.
        # bf16 operands, f32 accumulation.
        warped = jnp.dot(
            act.reshape(C * TH, W).astype(jnp.bfloat16),
            warp_ref[p],                                   # (W, W) bf16
            preferred_element_type=jnp.float32,
        ).reshape(C, TH, W)
        color = warped[:num_color]                         # (num_color, TH, W)
        alpha = warped[num_color:num_color + 1]            # (1, TH, W)
        # Back-to-front "over" compositing in f32; o_ref is resident across
        # the (arbitrary) plane axis so it acts as the accumulator.
        o_ref[...] = color * alpha + (1.0 - alpha) * o_ref[...]
        return carry

    lax.fori_loop(0, planes_per_step, body, 0, unroll=True)


def _warp_matrices(shift, disparities, fx, W):
    """Per-plane (W, W) bilinear sampling matrices for an x-shifted camera."""
    dx = fx * shift * disparities                              # (M,) pixel shifts
    x = jnp.arange(W, dtype=jnp.float32)
    src = jnp.clip(x[None, :] + dx[:, None], 0.0, W - 1.0)     # (M, W) source coords
    x0 = jnp.floor(src)
    frac = src - x0
    x0i = x0.astype(jnp.int32)
    x1i = jnp.minimum(x0i + 1, W - 1)
    j = jnp.arange(W)[None, :, None]                           # (1, W, 1)
    S = ((j == x0i[:, None, :]).astype(jnp.float32) * (1.0 - frac)[:, None, :]
         + (j == x1i[:, None, :]).astype(jnp.float32) * frac[:, None, :])
    return S                                                   # (M, W, W): warped[:, i] = feat[:, j] @ S[j, i]


def _choose_tiles(M, C, H, W, num_color, vmem_budget=24 << 20):
    """Row tile TH and planes-per-step P.  Budget keeps blocks well under the
    v7x 64 MiB VMEM (double-buffered bf16 inputs + resident f32 accumulator)."""
    def bytes_for(th, p):
        feat = 2 * p * C * th * W * 2          # double-buffered bf16 feature blocks
        warp = 2 * p * W * W * 2               # double-buffered bf16 warp blocks
        acc = num_color * th * W * 4           # resident f32 output accumulator
        return feat + warp + acc

    ths = [t for t in range(8, H + 1, 8) if H % t == 0] or [H]
    fitting = [t for t in ths if bytes_for(t, 1) <= vmem_budget] or [ths[0]]
    # Prefer >=2 row tiles so the "parallel" axis can split across TensorCores.
    multi = [t for t in fitting if H // t >= 2]
    th = max(multi) if multi else max(fitting)

    p_cap = 1
    for cand in (2, 4):
        if M % cand == 0:
            p_cap = cand
    p = 1
    for cand in range(1, p_cap + 1):
        if M % cand or bytes_for(th, cand) > vmem_budget:
            continue
        if M // cand < 2 <= M:                 # keep >=2 plane steps when M >= 2
            continue
        p = cand
    return th, p


@jax.jit
def iter_mpi_forward(features, disparities, shift, fx):
    """features: (1, M, C, H, W) parameter; returns rendered image (1, C-1, H, W)."""
    _, M, C, H, W = features.shape
    num_color = C - 1

    # HBM payload in bf16 (halves the dominant feature read); math stays f32 in-kernel.
    feats = features[0].astype(jnp.bfloat16)                   # (M, C, H, W)
    S = _warp_matrices(shift, disparities, fx, W).astype(jnp.bfloat16)  # (M, W, W)

    TH, P = _choose_tiles(M, C, H, W, num_color)
    grid = (H // TH, M // P)

    cost = pl.CostEstimate(
        flops=2 * M * C * H * W * W + 6 * M * num_color * H * W,
        transcendentals=M * C * H * W,
        bytes_accessed=feats.size * 2 + S.size * 2 + num_color * H * W * 4,
    )

    out = pl.pallas_call(
        functools.partial(_mpi_kernel, num_color=num_color, planes_per_step=P),
        out_shape=jax.ShapeDtypeStruct((num_color, H, W), jnp.float32),
        grid_spec=pltpu.PrefetchScalarGridSpec(
            num_scalar_prefetch=0,
            grid=grid,
            in_specs=[
                pl.BlockSpec((P, C, TH, W), lambda h, m: (m, 0, h, 0)),
                pl.BlockSpec((P, W, W), lambda h, m: (m, 0, 0)),
            ],
            out_specs=pl.BlockSpec((num_color, TH, W), lambda h, m: (0, h, 0)),
        ),
        compiler_params=pltpu.CompilerParams(
            dimension_semantics=("parallel", "arbitrary"),
            vmem_limit_bytes=64 * 1024 * 1024,   # <= physical on v5e/v6e/v7x
        ),
        cost_estimate=cost,
    )(feats, S)
    return out[None]                                           # (1, num_color, H, W)


def _reference(features, disparities, shift, fx):
    """Pure-JAX reference (same bf16-rounded features, f32 math)."""
    _, M, C, H, W = features.shape
    num_color = C - 1
    feats = features[0].astype(jnp.bfloat16).astype(jnp.float32)   # match kernel payload
    act = (jnp.tanh(feats) + 1.0) * 0.5                            # (M, C, H, W)
    S = _warp_matrices(shift, disparities, fx, W)                  # (M, W, W) f32
    warped = jnp.einsum("mchw,mwv->mchv", act, S)
    out = jnp.zeros((num_color, H, W), jnp.float32)
    for m in range(M):
        color = warped[m, :num_color]
        alpha = warped[m, num_color:num_color + 1]
        out = color * alpha + (1.0 - alpha) * out
    return out[None]


if __name__ == "__main__":
    # Shapes consistent with cfg.mpi_shape = (M, C, H, W); W = 128 keeps the
    # output lane axis dense (unmasked stores) while staying small.
    M, C, H, W = 4, 4, 16, 128

    key = jax.random.PRNGKey(0)
    # nn.Parameter(torch.zeros(...)) in __init__; use deterministic random
    # values instead so the rendered output is non-trivial.
    features = 0.5 * jax.random.normal(key, (1, M, C, H, W), dtype=jnp.float32)

    # utils.uniform_disparity_planes(depth_range=(1, 10), M), ordered far->near
    depth_near, depth_far = 1.0, 10.0
    disparities = jnp.linspace(1.0 / depth_far, 1.0 / depth_near, M,
                               dtype=jnp.float32)

    fx = jnp.float32(W)          # focal length in pixels (intrinsic)
    shift = jnp.float32(0.3)     # camera.translate_in_x(shift)

    out = iter_mpi_forward(features, disparities, shift, fx)
    out = jax.block_until_ready(out)

    ref = _reference(features, disparities, shift, fx)
    assert out.shape == (1, C - 1, H, W)
    assert bool(jnp.all(jnp.isfinite(out)))
    max_err = float(jnp.max(jnp.abs(out - ref)))
    assert max_err < 5e-2, f"max abs error vs reference: {max_err}"
    print("KERNEL_OK")
</pallas_src>

<mosaic_0001>
module attributes {stable_mosaic.version = 11 : i64} {
  func.func @_mpi_kernel(%arg0: i32, %arg1: i32, %arg2: memref<2x4x8x128xbf16, #tpu.memory_space<vmem>>, %arg3: memref<2x128x128xbf16, #tpu.memory_space<vmem>>, %arg4: memref<3x8x128xf32, #tpu.memory_space<vmem>>) attributes {dimension_semantics = [#tpu.dimension_semantics<parallel>, #tpu.dimension_semantics<arbitrary>], iteration_bounds = array<i64: 2, 2>, scalar_prefetch = 0 : i64, scratch_operands = 0 : i64, tpu.core_type = #tpu.core_type<tc>, window_params = [{transform_indices = @transform_0, window_bounds = array<i64: 2, 4, 8, 128>}, {transform_indices = @transform_1, window_bounds = array<i64: 2, 128, 128>}, {transform_indices = @transform_2, window_bounds = array<i64: 3, 8, 128>}]} {
    %c0_i32 = arith.constant 0 : i32
    %0 = arith.cmpi eq, %arg1, %c0_i32 : i32
    %1 = arith.extui %0 : i1 to i32
    %c0_i32_0 = arith.constant 0 : i32
    %2 = arith.cmpi ne, %1, %c0_i32_0 : i32
    scf.if %2 {
      %cst_30 = arith.constant 0.000000e+00 : f32
      %57 = vector.broadcast %cst_30 : f32 to vector<3x8x128xf32>
      %c0_31 = arith.constant 0 : index
      %c0_32 = arith.constant 0 : index
      %c0_33 = arith.constant 0 : index
      %58 = vector.load %arg4[%c0_31, %c0_32, %c0_33] : memref<3x8x128xf32, #tpu.memory_space<vmem>>, vector<3x8x128xf32>
      tpu.vector_store %arg4[%c0_31, %c0_32, %c0_33], %57 {strides = array<i32>} : memref<3x8x128xf32, #tpu.memory_space<vmem>>, vector<3x8x128xf32>,
    } else {
    }
    %c0_i32_1 = arith.constant 0 : i32
    %3 = arith.index_cast %c0_i32_1 : i32 to index
    %c0 = arith.constant 0 : index
    %c0_2 = arith.constant 0 : index
    %c0_3 = arith.constant 0 : index
    %4 = vector.load %arg2[%3, %c0, %c0_2, %c0_3] : memref<2x4x8x128xbf16, #tpu.memory_space<vmem>>, vector<1x4x8x128xbf16>
    %5 = vector.shape_cast %4 : vector<1x4x8x128xbf16> to vector<4x8x128xbf16>
    %6 = arith.extf %5 : vector<4x8x128xbf16> to vector<4x8x128xf32>
    %7 = math.tanh %6 : vector<4x8x128xf32>
    %cst = arith.constant 1.000000e+00 : f32
    %8 = vector.broadcast %cst : f32 to vector<4x8x128xf32>
    %9 = arith.addf %7, %8 : vector<4x8x128xf32>
    %cst_4 = arith.constant 5.000000e-01 : f32
    %10 = vector.broadcast %cst_4 : f32 to vector<4x8x128xf32>
    %11 = arith.mulf %9, %10 : vector<4x8x128xf32>
    %12 = vector.shape_cast %11 : vector<4x8x128xf32> to vector<32x128xf32>
    %13 = arith.truncf %12 : vector<32x128xf32> to vector<32x128xbf16>
    %14 = arith.index_cast %c0_i32_1 : i32 to index
    %c0_5 = arith.constant 0 : index
    %c0_6 = arith.constant 0 : index
    %15 = vector.load %arg3[%14, %c0_5, %c0_6] : memref<2x128x128xbf16, #tpu.memory_space<vmem>>, vector<1x128x128xbf16>
    %16 = vector.shape_cast %15 : vector<1x128x128xbf16> to vector<128x128xbf16>
    %cst_7 = arith.constant dense<0.000000e+00> : vector<32x128xf32>
    %17 = tpu.matmul %13, %16, %cst_7 {dimension_numbers = #tpu.dot_dimension_numbers<[1], [0], [0], [1], [0, 0, 1, 1], [], []>} : vector<32x128xbf16>, vector<128x128xbf16>, vector<32x128xf32> -> vector<32x128xf32>
    %18 = vector.shape_cast %17 : vector<32x128xf32> to vector<4x8x128xf32>
    %19 = vector.extract_strided_slice %18 {offsets = [0, 0, 0], sizes = [3, 8, 128], strides = [1, 1, 1]} : vector<4x8x128xf32> to vector<3x8x128xf32>
    %20 = vector.extract_strided_slice %18 {offsets = [3, 0, 0], sizes = [1, 8, 128], strides = [1, 1, 1]} : vector<4x8x128xf32> to vector<1x8x128xf32>
    %21 = vector.broadcast %20 : vector<1x8x128xf32> to vector<3x8x128xf32>
    %22 = arith.mulf %19, %21 : vector<3x8x128xf32>
    %cst_8 = arith.constant 1.000000e+00 : f32
    %23 = vector.broadcast %cst_8 : f32 to vector<1x8x128xf32>
    %24 = arith.subf %23, %20 : vector<1x8x128xf32>
    %c0_9 = arith.constant 0 : index
    %c0_10 = arith.constant 0 : index
    %c0_11 = arith.constant 0 : index
    %25 = vector.load %arg4[%c0_9, %c0_10, %c0_11] : memref<3x8x128xf32, #tpu.memory_space<vmem>>, vector<3x8x128xf32>
    %26 = vector.broadcast %24 : vector<1x8x128xf32> to vector<3x8x128xf32>
    %27 = arith.mulf %26, %25 : vector<3x8x128xf32>
    %28 = arith.addf %22, %27 : vector<3x8x128xf32>
    %c0_12 = arith.constant 0 : index
    %c0_13 = arith.constant 0 : index
    %c0_14 = arith.constant 0 : index
    %29 = vector.load %arg4[%c0_12, %c0_13, %c0_14] : memref<3x8x128xf32, #tpu.memory_space<vmem>>, vector<3x8x128xf32>
    tpu.vector_store %arg4[%c0_12, %c0_13, %c0_14], %28 {strides = array<i32>} : memref<3x8x128xf32, #tpu.memory_space<vmem>>, vector<3x8x128xf32>,
    %c1_i32 = arith.constant 1 : i32
    %30 = arith.index_cast %c1_i32 : i32 to index
    %c0_15 = arith.constant 0 : index
    %c0_16 = arith.constant 0 : index
    %c0_17 = arith.constant 0 : index
    %31 = vector.load %arg2[%30, %c0_15, %c0_16, %c0_17] : memref<2x4x8x128xbf16, #tpu.memory_space<vmem>>, vector<1x4x8x128xbf16>
    %32 = vector.shape_cast %31 : vector<1x4x8x128xbf16> to vector<4x8x128xbf16>
    %33 = arith.extf %32 : vector<4x8x128xbf16> to vector<4x8x128xf32>
    %34 = math.tanh %33 : vector<4x8x128xf32>
    %cst_18 = arith.constant 1.000000e+00 : f32
    %35 = vector.broadcast %cst_18 : f32 to vector<4x8x128xf32>
    %36 = arith.addf %34, %35 : vector<4x8x128xf32>
    %cst_19 = arith.constant 5.000000e-01 : f32
    %37 = vector.broadcast %cst_19 : f32 to vector<4x8x128xf32>
    %38 = arith.mulf %36, %37 : vector<4x8x128xf32>
    %39 = vector.shape_cast %38 : vector<4x8x128xf32> to vector<32x128xf32>
    %40 = arith.truncf %39 : vector<32x128xf32> to vector<32x128xbf16>
    %41 = arith.index_cast %c1_i32 : i32 to index
    %c0_20 = arith.constant 0 : index
    %c0_21 = arith.constant 0 : index
    %42 = vector.load %arg3[%41, %c0_20, %c0_21] : memref<2x128x128xbf16, #tpu.memory_space<vmem>>, vector<1x128x128xbf16>
    %43 = vector.shape_cast %42 : vector<1x128x128xbf16> to vector<128x128xbf16>
    %cst_22 = arith.constant dense<0.000000e+00> : vector<32x128xf32>
    %44 = tpu.matmul %40, %43, %cst_22 {dimension_numbers = #tpu.dot_dimension_numbers<[1], [0], [0], [1], [0, 0, 1, 1], [], []>} : vector<32x128xbf16>, vector<128x128xbf16>, vector<32x128xf32> -> vector<32x128xf32>
    %45 = vector.shape_cast %44 : vector<32x128xf32> to vector<4x8x128xf32>
    %46 = vector.extract_strided_slice %45 {offsets = [0, 0, 0], sizes = [3, 8, 128], strides = [1, 1, 1]} : vector<4x8x128xf32> to vector<3x8x128xf32>
    %47 = vector.extract_strided_slice %45 {offsets = [3, 0, 0], sizes = [1, 8, 128], strides = [1, 1, 1]} : vector<4x8x128xf32> to vector<1x8x128xf32>
    %48 = vector.broadcast %47 : vector<1x8x128xf32> to vector<3x8x128xf32>
    %49 = arith.mulf %46, %48 : vector<3x8x128xf32>
    %cst_23 = arith.constant 1.000000e+00 : f32
    %50 = vector.broadcast %cst_23 : f32 to vector<1x8x128xf32>
    %51 = arith.subf %50, %47 : vector<1x8x128xf32>
    %c0_24 = arith.constant 0 : index
    %c0_25 = arith.constant 0 : index
    %c0_26 = arith.constant 0 : index
    %52 = vector.load %arg4[%c0_24, %c0_25, %c0_26] : memref<3x8x128xf32, #tpu.memory_space<vmem>>, vector<3x8x128xf32>
    %53 = vector.broadcast %51 : vector<1x8x128xf32> to vector<3x8x128xf32>
    %54 = arith.mulf %53, %52 : vector<3x8x128xf32>
    %55 = arith.addf %49, %54 : vector<3x8x128xf32>
    %c0_27 = arith.constant 0 : index
    %c0_28 = arith.constant 0 : index
    %c0_29 = arith.constant 0 : index
    %56 = vector.load %arg4[%c0_27, %c0_28, %c0_29] : memref<3x8x128xf32, #tpu.memory_space<vmem>>, vector<3x8x128xf32>
    tpu.vector_store %arg4[%c0_27, %c0_28, %c0_29], %55 {strides = array<i32>} : memref<3x8x128xf32, #tpu.memory_space<vmem>>, vector<3x8x128xf32>,
    %c2_i32 = arith.constant 2 : i32
    return
  }
  func.func @transform_0(%arg0: i32, %arg1: i32) -> (i32, i32, i32, i32) {
    %c0_i32 = arith.constant 0 : i32
    %c0_i32_0 = arith.constant 0 : i32
    %c0_i32_1 = arith.constant 0 : i32
    return %arg1, %c0_i32, %arg0, %c0_i32_0 : i32, i32, i32, i32
  }
  func.func @transform_1(%arg0: i32, %arg1: i32) -> (i32, i32, i32) {
    %c0_i32 = arith.constant 0 : i32
    %c0_i32_0 = arith.constant 0 : i32
    %c0_i32_1 = arith.constant 0 : i32
    return %arg1, %c0_i32, %c0_i32_0 : i32, i32, i32
  }
  func.func @transform_2(%arg0: i32, %arg1: i32) -> (i32, i32, i32) {
    %c0_i32 = arith.constant 0 : i32
    %c0_i32_0 = arith.constant 0 : i32
    %c0_i32_1 = arith.constant 0 : i32
    return %c0_i32, %arg0, %c0_i32_0 : i32, i32, i32
  }
}

</mosaic_0001>

<llo_original>
// kernel: iter_mpi_forward.1
$region0: #{iter_mpi_forward.1}
  #allocation0 [shape = 'u32[]', space=smem, size = 0x4, offset = 0x4, fixed_abs, tag = 'smem constant byte address 0x4 - core index']
  #allocation1 [shape = 'u32[144,128]{1,0:T(1,128)}', space=vmem, size = 0x12000, scoped, tag = 'internal scratch']
  %s0 = inlined_call_operand.vmem [shape: bf16[4,4,16,128], index: 0, kind: input, shape index: {}]
  %s1 = inlined_call_operand.vmem [shape: bf16[4,128,128], index: 1, kind: input, shape index: {}]
  %s2 = inlined_call_operand.hbm [shape: f32[3,16,128], index: 2, kind: output, shape index: {}]
  %s3 = sld [smem:[#allocation0]]
  $region86: #{iter_mpi_forward.1} parent=0
    _
  %s5 = ssub.s32 1, %s3
  %s6 = scalar_select 0, %s5, %s3
  $region1: #{iter_mpi_forward.1} parent=0
    #allocation2 [shape = 'u8[32768]{0}', space=vmem, size = 0x8000, scoped, tag = 'input window, operand 0']
    #allocation3 [shape = 'u8[24576]{0}', space=vmem, size = 0x6000, scoped, tag = 'output window, operand 0']
    #allocation4 [shape = 's32[2]{0}', space=sflag, size = 0x8, scoped, tag = 'scoped memory for iter_mpi_forward.1']
    %7 = vsyncpa [#allocation4], 0
    %s8 = scalar_lea.sflag [#allocation4], 1
    %9 = vsyncpa %s8, 0
    loop: start=0, step=1, limit=6
    $region2: #{iter_mpi_forward.1} parent=1 // loop_pre_header
      _
    $region3: #{iter_mpi_forward.1} parent=1 // loop_header
      %s11 = sphi 0, %s15
      %p12 = scmp.ge.s32.totalorder %s11, 6
      %s18 = sphi 0, %s30
      %s19 = sphi 0, %s26
      %s20 = sphi 0, %s18
      %s21 = sphi 0, %s19
      %s22 = sphi 0, %s20
      %s23 = sphi 0, %s21
      %s35 = sphi 0, %s37
      %s38 = sphi 0, %s35
      %s39 = sphi 0, %s38
      %s55 = sphi 0, %s39
      %s61 = sphi 0, %s63
      %s64 = sphi 0, %s61
      %s65 = sphi 0, %s64
      %s81 = sphi 0, %s65
      %s87 = sphi 0, %s89
      %s90 = sphi 0, %s87
      %s91 = sphi 0, %s90
      %s107 = sphi 0, %s91
    $region4: #{iter_mpi_forward.1} parent=1 // loop_header_branch
      %14 = sbr.rel (%p12) target = $region8
    $region5: #{iter_mpi_forward.1} parent=1 // loop_body
      %s16 = ssub.s32 %s11, 1
      %s17 = ssub.s32 %s11, 2
      %s24 = sadd.s32 1, %s19
      %p25 = scmp.ge.s32.totalorder %s24, 2
      %s26 = scalar_select %p25, 0, %s24
      %s27 = sadd.s32 1, %s18
      %s28 = scalar_select %p25, %s27, %s18
      %p29 = scmp.ge.s32.totalorder %s28, 2
      %s30 = scalar_select %p29, 0, %s28
      %s31 = ssub.s32 %s19, %s26
      %s32 = ssub.s32 %s18, %s30
      %s33 = sor.u32 %s31, %s32
      %p34 = scmp.eq.s32.totalorder %s33, 0
      %s36 = sadd.s32 %s35, 1
      %s37 = scalar_select %p34, %s35, %s36
      %p40 = pneg %p34
      %p41 = scmp.eq.s32.totalorder %s11, 3
      %p42 = por %p40, %p41
      %p43 = scmp.ne.s32.totalorder %s35, %s38
      %p44 = scmp.eq.s32.totalorder %s11, 0
      %p45 = por %p43, %p44
      %p46 = scmp.ne.s32.totalorder %s35, %s38
      %p47 = scmp.eq.s32.totalorder %s16, 3
      %p48 = por %p46, %p47
      %p49 = scmp.ne.s32.totalorder %s38, %s39
      %p50 = scmp.eq.s32.totalorder %s16, 0
      %p51 = por %p49, %p50
      %p52 = scmp.ne.s32.totalorder %s38, %s39
      %p53 = scmp.eq.s32.totalorder %s17, 3
      %p54 = por %p52, %p53
      %p56 = scmp.ne.s32.totalorder %s39, %s55
      %p57 = scmp.eq.s32.totalorder %s17, 0
      %p58 = por %p56, %p57
      %s59 = ssub.s32 %s19, %s26
      %p60 = scmp.eq.s32.totalorder %s59, 0
      %s62 = sadd.s32 %s61, 1
      %s63 = scalar_select %p60, %s61, %s62
      %p66 = pneg %p60
      %p67 = scmp.eq.s32.totalorder %s11, 3
      %p68 = por %p66, %p67
      %p69 = scmp.ne.s32.totalorder %s61, %s64
      %p70 = scmp.eq.s32.totalorder %s11, 0
      %p71 = por %p69, %p70
      %p72 = scmp.ne.s32.totalorder %s61, %s64
      %p73 = scmp.eq.s32.totalorder %s16, 3
      %p74 = por %p72, %p73
      %p75 = scmp.ne.s32.totalorder %s64, %s65
      %p76 = scmp.eq.s32.totalorder %s16, 0
      %p77 = por %p75, %p76
      %p78 = scmp.ne.s32.totalorder %s64, %s65
      %p79 = scmp.eq.s32.totalorder %s17, 3
      %p80 = por %p78, %p79
      %p82 = scmp.ne.s32.totalorder %s65, %s81
      %p83 = scmp.eq.s32.totalorder %s17, 0
      %p84 = por %p82, %p83
      %s85 = ssub.s32 %s18, %s30
      %p86 = scmp.eq.s32.totalorder %s85, 0
      %s88 = sadd.s32 %s87, 1
      %s89 = scalar_select %p86, %s87, %s88
      %p92 = pneg %p86
      %p93 = scmp.eq.s32.totalorder %s11, 3
      %p94 = por %p92, %p93
      %p95 = scmp.ne.s32.totalorder %s87, %s90
      %p96 = scmp.eq.s32.totalorder %s11, 0
      %p97 = por %p95, %p96
      %p98 = scmp.ne.s32.totalorder %s87, %s90
      %p99 = scmp.eq.s32.totalorder %s16, 3
      %p100 = por %p98, %p99
      %p101 = scmp.ne.s32.totalorder %s90, %s91
      %p102 = scmp.eq.s32.totalorder %s16, 0
      %p103 = por %p101, %p102
      %p104 = scmp.ne.s32.totalorder %s90, %s91
      %p105 = scmp.eq.s32.totalorder %s17, 3
      %p106 = por %p104, %p105
      %p108 = scmp.ne.s32.totalorder %s91, %s107
      %p109 = scmp.eq.s32.totalorder %s17, 0
      %p110 = por %p108, %p109
      %p111 = scmp.le.s32.totalorder 1, %s11
      %p112 = scmp.lt.s32.totalorder %s11, 5
      %p113 = pnand %p111, %p112
      %p114 = pneg %p113
      // Predicated region
      $region9: #{iter_mpi_forward.1} parent=5 // pred_check
        _
      $region10: #{iter_mpi_forward.1} parent=5 // pred_check_branch
        %116 = sbr.rel (%p113) target = $region12
      $region11: #{iter_mpi_forward.1} parent=5 // pred_region
        %s117 = ssub.s32 %s11, 1
      $region12: #{iter_mpi_forward.1} parent=5 // pred_fallthru
        _
      %p118 = scmp.lt.s32.totalorder %s11, 4
      // Predicated region
      $region13: #{iter_mpi_forward.1} parent=5 // pred_check
        %p119 = pneg %p118
      $region14: #{iter_mpi_forward.1} parent=5 // pred_check_branch
        %121 = sbr.rel (%p119) target = $region16
      $region15: #{iter_mpi_forward.1} parent=5 // pred_region
        // Predicated region
        $region17: #{iter_mpi_forward.1} parent=15 // pred_check
          %p122 = pneg %p45
        $region18: #{iter_mpi_forward.1} parent=15 // pred_check_branch
          %124 = sbr.rel (%p122) target = $region20
        $region19: #{iter_mpi_forward.1} parent=15 // pred_region
          %s125 = sand.u32 %s35, 1
          %s126 = sand.u32 %s35, 1
          %s127 = smul.addr %s126, 32
          %s128 = scalar_lea.vmem [#allocation2], %s127
          %s129 = smul.u32 2, %s19
          %s130 = smul.addr %s129, 8
          %s131 = sadd.s32 %s18, %s130
          %s132 = smul.addr %s131, 4
          %s133 = scalar_lea.vmem %s0, %s132
          // Predicated region
          $region21: #{iter_mpi_forward.1} parent=19 // pred_check
            _
          $region22: #{iter_mpi_forward.1} parent=19 // pred_check_branch
            %135 = sbr.rel (0) target = $region24
          $region23: #{iter_mpi_forward.1} parent=19 // pred_region
            // Predicated region
            $region25: #{iter_mpi_forward.1} parent=23 // pred_check
              _
            $region26: #{iter_mpi_forward.1} parent=23 // pred_check_branch
              %137 = sbr.rel target = $region28
            $region27: #{iter_mpi_forward.1} parent=23 // pred_region
              // Predicated region
              $region40: #{iter_mpi_forward.1} parent=27 // pred_check
                _
              $region41: #{iter_mpi_forward.1} parent=27 // pred_check_branch
                %167 = sbr.rel (0) target = $region43
              $region42: #{iter_mpi_forward.1} parent=27 // pred_region
                loop: start=0, step=1, limit=1
                $region44: #{iter_mpi_forward.1} parent=42 // loop_pre_header
                  _
                $region45: #{iter_mpi_forward.1} parent=42 // loop_header
                  %s169 = sphi 0, %s173
                  %p170 = scmp.ge.s32.totalorder %s169, 1
                  %s174 = sphi %s133, %s133
                  %s175 = sphi %s128, %s128
                $region46: #{iter_mpi_forward.1} parent=42 // loop_header_branch
                  %172 = sbr.rel (%p170) target = $region50
                $region47: #{iter_mpi_forward.1} parent=42 // loop_body
                  _
                $region48: #{iter_mpi_forward.1} parent=42 // loop_footer
                  %s173 = sadd.s32 1, %s169
                $region49: #{iter_mpi_forward.1} parent=42 // loop_footer_branch
                  %168 = sbr.rel target = $region45
                $region50: #{iter_mpi_forward.1} parent=42 // loop_exit
                  _
                %s177 = ssub.s32 16, 1
                loop: start=0, step=1, limit=1
                $region51: #{iter_mpi_forward.1} parent=42 // loop_pre_header
                  _
                $region52: #{iter_mpi_forward.1} parent=42 // loop_header
                  %s179 = sphi 0, %s183
                  %p180 = scmp.ge.s32.totalorder %s179, 1
                  %s184 = sphi %s133, %s133
                  %s185 = sphi %s128, %s128
                $region53: #{iter_mpi_forward.1} parent=42 // loop_header_branch
                  %182 = sbr.rel (%p180) target = $region57
                $region54: #{iter_mpi_forward.1} parent=42 // loop_body
                  %v186 = vld [vmem:[%s184] sm:%s177]
                  %187 = vst [vmem:[%s185] sm:%s177] %v186
                  %v188 = vld [vmem:[%s184 + $0x8] sm:%s177]
                  %189 = vst [vmem:[%s185 + $0x4] sm:%s177] %v188
                  %v190 = vld [vmem:[%s184 + $0x10] sm:%s177]
                  %191 = vst [vmem:[%s185 + $0x8] sm:%s177] %v190
                  %v192 = vld [vmem:[%s184 + $0x18] sm:%s177]
                  %193 = vst [vmem:[%s185 + $0xc] sm:%s177] %v192
                  %v194 = vld [vmem:[%s184 + $0x20] sm:%s177]
                  %195 = vst [vmem:[%s185 + $0x10] sm:%s177] %v194
                  %v196 = vld [vmem:[%s184 + $0x28] sm:%s177]
                  %197 = vst [vmem:[%s185 + $0x14] sm:%s177] %v196
                  %v198 = vld [vmem:[%s184 + $0x30] sm:%s177]
                  %199 = vst [vmem:[%s185 + $0x18] sm:%s177] %v198
                  %v200 = vld [vmem:[%s184 + $0x38] sm:%s177]
                  %201 = vst [vmem:[%s185 + $0x1c] sm:%s177] %v200
                $region55: #{iter_mpi_forward.1} parent=42 // loop_footer
                  %s183 = sadd.s32 1, %s179
                $region56: #{iter_mpi_forward.1} parent=42 // loop_footer_branch
                  %178 = sbr.rel target = $region52
                $region57: #{iter_mpi_forward.1} parent=42 // loop_exit
                  _
              $region43: #{iter_mpi_forward.1} parent=27 // pred_fallthru
                _
            $region28: #{iter_mpi_forward.1} parent=23 // pred_fallthru
              _
            // Predicated region
            $region29: #{iter_mpi_forward.1} parent=23 // pred_check
              _
            $region30: #{iter_mpi_forward.1} parent=23 // pred_check_branch
              %139 = sbr.rel (0) target = $region32
            $region31: #{iter_mpi_forward.1} parent=23 // pred_region
              %s141 = ssub.s32 16, 1
              loop: start=0, step=1, limit=1
              $region33: #{iter_mpi_forward.1} parent=31 // loop_pre_header
                _
              $region34: #{iter_mpi_forward.1} parent=31 // loop_header
                %s143 = sphi 0, %s147
                %p144 = scmp.ge.s32.totalorder %s143, 1
                %s148 = sphi %s133, %s133
                %s149 = sphi %s128, %s128
              $region35: #{iter_mpi_forward.1} parent=31 // loop_header_branch
                %146 = sbr.rel (%p144) target = $region39
              $region36: #{iter_mpi_forward.1} parent=31 // loop_body
                %v150 = vld [vmem:[%s148] sm:%s141]
                %151 = vst [vmem:[%s149] sm:%s141] %v150
                %v152 = vld [vmem:[%s148 + $0x8] sm:%s141]
                %153 = vst [vmem:[%s149 + $0x4] sm:%s141] %v152
                %v154 = vld [vmem:[%s148 + $0x10] sm:%s141]
                %155 = vst [vmem:[%s149 + $0x8] sm:%s141] %v154
                %v156 = vld [vmem:[%s148 + $0x18] sm:%s141]
                %157 = vst [vmem:[%s149 + $0xc] sm:%s141] %v156
                %v158 = vld [vmem:[%s148 + $0x20] sm:%s141]
                %159 = vst [vmem:[%s149 + $0x10] sm:%s141] %v158
                %v160 = vld [vmem:[%s148 + $0x28] sm:%s141]
                %161 = vst [vmem:[%s149 + $0x14] sm:%s141] %v160
                %v162 = vld [vmem:[%s148 + $0x30] sm:%s141]
                %163 = vst [vmem:[%s149 + $0x18] sm:%s141] %v162
                %v164 = vld [vmem:[%s148 + $0x38] sm:%s141]
                %165 = vst [vmem:[%s149 + $0x1c] sm:%s141] %v164
              $region37: #{iter_mpi_forward.1} parent=31 // loop_footer
                %s147 = sadd.s32 1, %s143
              $region38: #{iter_mpi_forward.1} parent=31 // loop_footer_branch
                %142 = sbr.rel target = $region34
              $region39: #{iter_mpi_forward.1} parent=31 // loop_exit
                _
            $region32: #{iter_mpi_forward.1} parent=23 // pred_fallthru
              _
          $region24: #{iter_mpi_forward.1} parent=19 // pred_fallthru
            _
          %202 = vnop
        $region20: #{iter_mpi_forward.1} parent=15 // pred_fallthru
          _
        // Predicated region
        $region58: #{iter_mpi_forward.1} parent=15 // pred_check
          %p203 = pneg %p71
        $region59: #{iter_mpi_forward.1} parent=15 // pred_check_branch
          %205 = sbr.rel (%p203) target = $region61
        $region60: #{iter_mpi_forward.1} parent=15 // pred_region
          %s206 = smul.u32 2, %s19
          %p207 = scmp.lt.s32.totalorder %s206, 3
          %s208 = scalar_select %p207, %s206, 3
          %s209 = smul.addr %s208, 16
          %s210 = smul.addr %s209, 4
          %s211 = scalar_lea.vmem %s1, %s210
          %s212 = smul.u32 2, %s19
        $region61: #{iter_mpi_forward.1} parent=15 // pred_fallthru
          _
      $region16: #{iter_mpi_forward.1} parent=5 // pred_fallthru
        _
      %p213 = scmp.le.s32.totalorder 1, %s11
      %p214 = scmp.lt.s32.totalorder %s11, 5
      %p215 = pnand %p213, %p214
      %p216 = pneg %p215
      // Predicated region
      $region62: #{iter_mpi_forward.1} parent=5 // pred_check
        _
      $region63: #{iter_mpi_forward.1} parent=5 // pred_check_branch
        %218 = sbr.rel (%p215) target = $region65
      $region64: #{iter_mpi_forward.1} parent=5 // pred_region
        %s219 = ssub.s32 %s11, 1
        %s220 = sand.u32 %s38, 1
        %s221 = sand.u32 %s38, 1
        %s222 = smul.addr %s221, 32
        %s223 = scalar_lea.vmem [#allocation2], %s222
        // Predicated region
        $region66: #{iter_mpi_forward.1} parent=64 // pred_check
          %p224 = pneg %p51
        $region67: #{iter_mpi_forward.1} parent=64 // pred_check_branch
          %226 = sbr.rel (%p224) target = $region69
        $region68: #{iter_mpi_forward.1} parent=64 // pred_region
          _
        $region69: #{iter_mpi_forward.1} parent=64 // pred_fallthru
          _
        %s227 = sand.u32 %s38, 1
        %s228 = sand.u32 %s38, 1
        %s229 = smul.addr %s228, 32
        %s230 = scalar_lea.vmem [#allocation2], %s229
        %p231 = pneg %p51
        %p232 = pneg %p48
        %s233 = smul.u32 2, %s21
        %p234 = scmp.lt.s32.totalorder %s233, 3
        %s235 = scalar_select %p234, %s233, 3
        %s236 = smul.addr %s235, 16
        %s237 = smul.addr %s236, 4
        %s238 = scalar_lea.vmem %s1, %s237
        %p239 = pneg %p77
        %p240 = pneg %p74
        %p241 = pneg %p103
        %p242 = pneg %p100
        %s243 = sand.u32 %s90, 1
        %s244 = scalar_lea.sflag [#allocation4], %s243
        %s245 = sand.u32 %s90, 1
        %s246 = smul.addr %s245, 24
        %s247 = scalar_lea.vmem [#allocation3], %s246
        %s248 = smul.u32 2, %s21
        %s249 = smul.u32 2, %s21
        %p250 = scmp.lt.s32.totalorder %s249, 3
        %s251 = scalar_select %p250, %s249, 3
        %s252 = smul.addr %s251, 16
        %s253 = smul.addr %s252, 4
        %s254 = scalar_lea.vmem %s1, %s253
        %s255 = smul.u32 2, %s21
        %p257 = scmp.eq.s32.totalorder %s21, 0
        // Predicated region
        $region70: #{iter_mpi_forward.1} parent=64 // pred_check
          %p258 = pneg %p257
        $region71: #{iter_mpi_forward.1} parent=64 // pred_check_branch
          %260 = sbr.rel (%p258) target = $region73
        $region72: #{iter_mpi_forward.1} parent=64 // pred_region
          %261 = vst [vmem:[%s247] sm:$0xff] 0.0
          %262 = vst [vmem:[%s247 + $0x8] sm:$0xff] 0.0
          %263 = vst [vmem:[%s247 + $0x10] sm:$0xff] 0.0
        $region73: #{iter_mpi_forward.1} parent=64 // pred_fallthru
          _
        %v264 = vld [vmem:[%s223] sm:$0xf]
        %v265 = vld [vmem:[%s223 + $0x4] sm:$0xf]
        %v266 = vld [vmem:[%s223 + $0x8] sm:$0xf]
        %v267 = vld [vmem:[%s223 + $0xc] sm:$0xf]
        %v268 = vunpack.c.l.bf16 %v264
        %v269 = vunpack.c.l.bf16 %v265
        %v270 = vunpack.c.l.bf16 %v266
        %v271 = vunpack.c.l.bf16 %v267
        %v272 = vtanh.pop %v268
        %v273 = vtanh.pop %v269
        %v274 = vtanh.pop %v270
        %v275 = vtanh.pop %v271
        %v276 = vadd.f32 %v272, 1.0
        %v277 = vadd.f32 %v273, 1.0
        %v278 = vadd.f32 %v274, 1.0
        %v279 = vadd.f32 %v275, 1.0
        %v280 = vmul.f32 %v276, 0.5
        %v281 = vmul.f32 %v277, 0.5
        %v282 = vmul.f32 %v278, 0.5
        %v283 = vmul.f32 %v279, 0.5
        %v284 = vpack.c.bf16 %v281, %v280
        %v285 = vpack.c.bf16 %v283, %v282
        %v286 = vld [vmem:[%s254] sm:$0xf]
        %v287 = vld [vmem:[%s254 + $0x4] sm:$0xf]
        %v288 = vld [vmem:[%s254 + $0x8] sm:$0xf]
        %v289 = vld [vmem:[%s254 + $0xc] sm:$0xf]
        %v290 = vld [vmem:[%s254 + $0x10] sm:$0xf]
        %v291 = vld [vmem:[%s254 + $0x14] sm:$0xf]
        %v292 = vld [vmem:[%s254 + $0x18] sm:$0xf]
        %v293 = vld [vmem:[%s254 + $0x1c] sm:$0xf]
        %v294 = vld [vmem:[%s254 + $0x20] sm:$0xf]
        %v295 = vld [vmem:[%s254 + $0x24] sm:$0xf]
        %v296 = vld [vmem:[%s254 + $0x28] sm:$0xf]
        %v297 = vld [vmem:[%s254 + $0x2c] sm:$0xf]
        %v298 = vld [vmem:[%s254 + $0x30] sm:$0xf]
        %v299 = vld [vmem:[%s254 + $0x34] sm:$0xf]
        %v300 = vld [vmem:[%s254 + $0x38] sm:$0xf]
        %v301 = vld [vmem:[%s254 + $0x3c] sm:$0xf]
        %v318 = vunpack.c.l.b16 %v286
        %v319 = vunpack.c.l.b16 %v287
        %v320 = vunpack.c.l.b16 %v288
        %v321 = vunpack.c.l.b16 %v289
        %v322 = vunpack.c.l.b16 %v290
        %v323 = vunpack.c.l.b16 %v291
        %v324 = vunpack.c.l.b16 %v292
        %v325 = vunpack.c.l.b16 %v293
        %v326 = vunpack.c.l.b16 %v294
        %v327 = vunpack.c.l.b16 %v295
        %v328 = vunpack.c.l.b16 %v296
        %v329 = vunpack.c.l.b16 %v297
        %v330 = vunpack.c.l.b16 %v298
        %v331 = vunpack.c.l.b16 %v299
        %v332 = vunpack.c.l.b16 %v300
        %v333 = vunpack.c.l.b16 %v301
        %v334 = vpack.c.b16 %v319, %v318
        %v335 = vpack.c.b16 %v321, %v320
        %v336 = vpack.c.b16 %v323, %v322
        %v337 = vpack.c.b16 %v325, %v324
        %v338 = vpack.c.b16 %v327, %v326
        %v339 = vpack.c.b16 %v329, %v328
        %v340 = vpack.c.b16 %v331, %v330
        %v341 = vpack.c.b16 %v333, %v332
        %350 = vmatprep.subr.bf16.mxu0 0
        %351 = vmatpush1.bf16.msra.mxu0 %v341
        %352 = vmatprep.subr.bf16.mxu0 0
        %353 = vmatpush1.bf16.msra.mxu0 %v340
        %354 = vmatprep.subr.bf16.mxu0 0
        %355 = vmatpush1.bf16.msra.mxu0 %v339
        %356 = vmatprep.subr.bf16.mxu0 0
        %357 = vmatpush1.bf16.msra.mxu0 %v338
        %358 = vmatprep.subr.bf16.mxu0 0
        %359 = vmatpush1.bf16.msra.mxu0 %v337
        %360 = vmatprep.subr.bf16.mxu0 0
        %361 = vmatpush1.bf16.msra.mxu0 %v336
        %362 = vmatprep.subr.bf16.mxu0 0
        %363 = vmatpush1.bf16.msra.mxu0 %v335
        %364 = vmatprep.subr.bf16.mxu0 0
        %365 = vmatpush1.bf16.msra.mxu0 %v334
        %366 = vmatprep.subr.bf16.mxu0 0
        %367 = vmatpush2.bf16.msra.mxu0 0
        %368 = vmatprep.subr.bf16.mxu0 0
        %369 = vmatpush2.bf16.msra.mxu0 0
        %370 = vmatprep.subr.bf16.mxu0 0
        %371 = vmatpush2.bf16.msra.mxu0 0
        %372 = vmatprep.subr.bf16.mxu0 0
        %373 = vmatpush2.bf16.msra.mxu0 0
        %374 = vmatprep.subr.bf16.mxu0 0
        %375 = vmatpush2.bf16.msra.mxu0 0
        %376 = vmatprep.subr.bf16.mxu0 0
        %377 = vmatpush2.bf16.msra.mxu0 0
        %378 = vmatprep.subr.bf16.mxu0 0
        %379 = vmatpush2.bf16.msra.mxu0 0
        %380 = vmatprep.subr.bf16.mxu0 0
        %381 = vmatpush2.bf16.msra.mxu0 0
        %382 = vmatprep.mubr.bf16.mxu0 0
        %383 = vmatmul.mubr.bf16.gmra.mxu0 %v284
        %v384 = vpop.f32.mrf.mxu0
        %v385 = vadd.f32 0.0, %v384
        %v386 = vpop.f32.mrf.mxu0
        %v387 = vpop.f32.mrf.mxu0
        %v388 = vadd.f32 0.0, %v387
        %v389 = vpop.f32.mrf.mxu0
        %390 = vmatprep.mubr.bf16.mxu0 0
        %391 = vmatmul.mubr.bf16.gmra.mxu0 %v285
        %v392 = vpop.f32.mrf.mxu0
        %v393 = vadd.f32 0.0, %v392
        %v394 = vpop.f32.mrf.mxu0
        %v395 = vpop.f32.mrf.mxu0
        %v396 = vadd.f32 0.0, %v395
        %v397 = vpop.f32.mrf.mxu0
        %398 = vdwg.mxu0
        %v399 = vmul.f32 %v385, %v396
        %v400 = vmul.f32 %v388, %v396
        %v401 = vmul.f32 %v393, %v396
        %v402 = vsub.f32 1.0, %v396
        %v403 = vld [vmem:[%s247] sm:$0xff]
        %v404 = vld [vmem:[%s247 + $0x8] sm:$0xff]
        %v405 = vld [vmem:[%s247 + $0x10] sm:$0xff]
        %v406 = vmul.f32 %v402, %v403
        %v407 = vmul.f32 %v402, %v404
        %v408 = vmul.f32 %v402, %v405
        %v409 = vadd.f32 %v399, %v406
        %v410 = vadd.f32 %v400, %v407
        %v411 = vadd.f32 %v401, %v408
        %412 = vst [vmem:[%s247] sm:$0xff] %v409
        %413 = vst [vmem:[%s247 + $0x8] sm:$0xff] %v410
        %414 = vst [vmem:[%s247 + $0x10] sm:$0xff] %v411
        %s415 = scalar_lea.vmem %s223, 16 [#allocation2]
        %v416 = vld [vmem:[%s415] sm:$0xf]
        %v417 = vld [vmem:[%s415 + $0x4] sm:$0xf]
        %v418 = vld [vmem:[%s415 + $0x8] sm:$0xf]
        %v419 = vld [vmem:[%s415 + $0xc] sm:$0xf]
        %v420 = vunpack.c.l.bf16 %v416
        %v421 = vunpack.c.l.bf16 %v417
        %v422 = vunpack.c.l.bf16 %v418
        %v423 = vunpack.c.l.bf16 %v419
        %v424 = vtanh.pop %v420
        %v425 = vtanh.pop %v421
        %v426 = vtanh.pop %v422
        %v427 = vtanh.pop %v423
        %v428 = vadd.f32 %v424, 1.0
        %v429 = vadd.f32 %v425, 1.0
        %v430 = vadd.f32 %v426, 1.0
        %v431 = vadd.f32 %v427, 1.0
        %v432 = vmul.f32 %v428, 0.5
        %v433 = vmul.f32 %v429, 0.5
        %v434 = vmul.f32 %v430, 0.5
        %v435 = vmul.f32 %v431, 0.5
        %v436 = vpack.c.bf16 %v433, %v432
        %v437 = vpack.c.bf16 %v435, %v434
        %s438 = scalar_lea.vmem %s254, 64
        %v439 = vld [vmem:[%s438] sm:$0xf]
        %v440 = vld [vmem:[%s438 + $0x4] sm:$0xf]
        %v441 = vld [vmem:[%s438 + $0x8] sm:$0xf]
        %v442 = vld [vmem:[%s438 + $0xc] sm:$0xf]
        %v443 = vld [vmem:[%s438 + $0x10] sm:$0xf]
        %v444 = vld [vmem:[%s438 + $0x14] sm:$0xf]
        %v445 = vld [vmem:[%s438 + $0x18] sm:$0xf]
        %v446 = vld [vmem:[%s438 + $0x1c] sm:$0xf]
        %v447 = vld [vmem:[%s438 + $0x20] sm:$0xf]
        %v448 = vld [vmem:[%s438 + $0x24] sm:$0xf]
        %v449 = vld [vmem:[%s438 + $0x28] sm:$0xf]
        %v450 = vld [vmem:[%s438 + $0x2c] sm:$0xf]
        %v451 = vld [vmem:[%s438 + $0x30] sm:$0xf]
        %v452 = vld [vmem:[%s438 + $0x34] sm:$0xf]
        %v453 = vld [vmem:[%s438 + $0x38] sm:$0xf]
        %v454 = vld [vmem:[%s438 + $0x3c] sm:$0xf]
        %v471 = vunpack.c.l.b16 %v439
        %v472 = vunpack.c.l.b16 %v440
        %v473 = vunpack.c.l.b16 %v441
        %v474 = vunpack.c.l.b16 %v442
        %v475 = vunpack.c.l.b16 %v443
        %v476 = vunpack.c.l.b16 %v444
        %v477 = vunpack.c.l.b16 %v445
        %v478 = vunpack.c.l.b16 %v446
        %v479 = vunpack.c.l.b16 %v447
        %v480 = vunpack.c.l.b16 %v448
        %v481 = vunpack.c.l.b16 %v449
        %v482 = vunpack.c.l.b16 %v450
        %v483 = vunpack.c.l.b16 %v451
        %v484 = vunpack.c.l.b16 %v452
        %v485 = vunpack.c.l.b16 %v453
        %v486 = vunpack.c.l.b16 %v454
        %v487 = vpack.c.b16 %v472, %v471
        %v488 = vpack.c.b16 %v474, %v473
        %v489 = vpack.c.b16 %v476, %v475
        %v490 = vpack.c.b16 %v478, %v477
        %v491 = vpack.c.b16 %v480, %v479
        %v492 = vpack.c.b16 %v482, %v481
        %v493 = vpack.c.b16 %v484, %v483
        %v494 = vpack.c.b16 %v486, %v485
        %503 = vmatprep.subr.bf16.mxu0 0
        %504 = vmatpush1.bf16.msra.mxu0 %v494
        %505 = vmatprep.subr.bf16.mxu0 0
        %506 = vmatpush1.bf16.msra.mxu0 %v493
        %507 = vmatprep.subr.bf16.mxu0 0
        %508 = vmatpush1.bf16.msra.mxu0 %v492
        %509 = vmatprep.subr.bf16.mxu0 0
        %510 = vmatpush1.bf16.msra.mxu0 %v491
        %511 = vmatprep.subr.bf16.mxu0 0
        %512 = vmatpush1.bf16.msra.mxu0 %v490
        %513 = vmatprep.subr.bf16.mxu0 0
        %514 = vmatpush1.bf16.msra.mxu0 %v489
        %515 = vmatprep.subr.bf16.mxu0 0
        %516 = vmatpush1.bf16.msra.mxu0 %v488
        %517 = vmatprep.subr.bf16.mxu0 0
        %518 = vmatpush1.bf16.msra.mxu0 %v487
        %519 = vmatprep.subr.bf16.mxu0 0
        %520 = vmatpush2.bf16.msra.mxu0 0
        %521 = vmatprep.subr.bf16.mxu0 0
        %522 = vmatpush2.bf16.msra.mxu0 0
        %523 = vmatprep.subr.bf16.mxu0 0
        %524 = vmatpush2.bf16.msra.mxu0 0
        %525 = vmatprep.subr.bf16.mxu0 0
        %526 = vmatpush2.bf16.msra.mxu0 0
        %527 = vmatprep.subr.bf16.mxu0 0
        %528 = vmatpush2.bf16.msra.mxu0 0
        %529 = vmatprep.subr.bf16.mxu0 0
        %530 = vmatpush2.bf16.msra.mxu0 0
        %531 = vmatprep.subr.bf16.mxu0 0
        %532 = vmatpush2.bf16.msra.mxu0 0
        %533 = vmatprep.subr.bf16.mxu0 0
        %534 = vmatpush2.bf16.msra.mxu0 0
        %535 = vmatprep.mubr.bf16.mxu0 0
        %536 = vmatmul.mubr.bf16.gmra.mxu0 %v436
        %v537 = vpop.f32.mrf.mxu0
        %v538 = vadd.f32 0.0, %v537
        %v539 = vpop.f32.mrf.mxu0
        %v540 = vpop.f32.mrf.mxu0
        %v541 = vadd.f32 0.0, %v540
        %v542 = vpop.f32.mrf.mxu0
        %543 = vmatprep.mubr.bf16.mxu0 0
        %544 = vmatmul.mubr.bf16.gmra.mxu0 %v437
        %v545 = vpop.f32.mrf.mxu0
        %v546 = vadd.f32 0.0, %v545
        %v547 = vpop.f32.mrf.mxu0
        %v548 = vpop.f32.mrf.mxu0
        %v549 = vadd.f32 0.0, %v548
        %v550 = vpop.f32.mrf.mxu0
        %551 = vdwg.mxu0
        %v552 = vmul.f32 %v538, %v549
        %v553 = vmul.f32 %v541, %v549
        %v554 = vmul.f32 %v546, %v549
        %v555 = vsub.f32 1.0, %v549
        %v556 = vld [vmem:[%s247] sm:$0xff]
        %v557 = vld [vmem:[%s247 + $0x8] sm:$0xff]
        %v558 = vld [vmem:[%s247 + $0x10] sm:$0xff]
        %v559 = vmul.f32 %v555, %v556
        %v560 = vmul.f32 %v555, %v557
        %v561 = vmul.f32 %v555, %v558
        %v562 = vadd.f32 %v552, %v559
        %v563 = vadd.f32 %v553, %v560
        %v564 = vadd.f32 %v554, %v561
        %565 = vst [vmem:[%s247] sm:$0xff] %v562
        %566 = vst [vmem:[%s247 + $0x8] sm:$0xff] %v563
        %567 = vst [vmem:[%s247 + $0x10] sm:$0xff] %v564
        %s568 = sand.u32 %s90, 1
        %s569 = scalar_lea.sflag [#allocation4], %s568
        %s570 = sand.u32 %s90, 1
        %s571 = smul.addr %s570, 24
        %s572 = scalar_lea.vmem [#allocation3], %s571
        // Predicated region
        $region74: #{iter_mpi_forward.1} parent=64 // pred_check
          %p573 = pneg %p100
        $region75: #{iter_mpi_forward.1} parent=64 // pred_check_branch
          %575 = sbr.rel (%p573) target = $region77
        $region76: #{iter_mpi_forward.1} parent=64 // pred_region
          %s577 = ssub.s32 384, 384
          %578 = vsyncadd %s569, %s577
          %s579 = smul.addr %s20, 128
          %s580 = scalar_lea.hbm %s2, %s579
          %s581 = sshll.u32 %s572, 4
          %s582 = int_to_ptr.vmem [resolvable:$true] %s581
          %587 = dma.vmem_to_hbm [thread:$0]  %s582, 384, %s580, %s569, 128, 256, 8
        $region77: #{iter_mpi_forward.1} parent=64 // pred_fallthru
          _
      $region65: #{iter_mpi_forward.1} parent=5 // pred_fallthru
        _
      %p588 = scmp.le.s32.totalorder 2, %s11
      // Predicated region
      $region78: #{iter_mpi_forward.1} parent=5 // pred_check
        %p589 = pneg %p588
      $region79: #{iter_mpi_forward.1} parent=5 // pred_check_branch
        %591 = sbr.rel (%p589) target = $region81
      $region80: #{iter_mpi_forward.1} parent=5 // pred_region
        %s592 = ssub.s32 %s11, 2
        // Predicated region
        $region82: #{iter_mpi_forward.1} parent=80 // pred_check
          %p593 = pneg %p106
        $region83: #{iter_mpi_forward.1} parent=80 // pred_check_branch
          %595 = sbr.rel (%p593) target = $region85
        $region84: #{iter_mpi_forward.1} parent=80 // pred_region
          %s596 = sand.u32 %s91, 1
          %s597 = scalar_lea.sflag [#allocation4], %s596
          %s598 = sand.u32 %s91, 1
          %s599 = smul.addr %s598, 24
          %s600 = scalar_lea.vmem [#allocation3], %s599
          %601 = dma.done %s597, 384
        $region85: #{iter_mpi_forward.1} parent=80 // pred_fallthru
          _
      $region81: #{iter_mpi_forward.1} parent=5 // pred_fallthru
        _
    $region6: #{iter_mpi_forward.1} parent=1 // loop_footer
      %s15 = sadd.s32 1, %s11
    $region7: #{iter_mpi_forward.1} parent=1 // loop_footer_branch
      %10 = sbr.rel target = $region3
    $region8: #{iter_mpi_forward.1} parent=1 // loop_exit
      _
    %602 = vsyncpa [#allocation4], 1
    %s603 = scalar_lea.sflag [#allocation4], 1
    %604 = vsyncpa %s603, 1

</llo_original>
